<compile_context>
chip_gen: v6e
topology: v6e:2x2x1
jax: 0.10.0
libtpu: 0.0.40
codegen_flags: <defaults>
</compile_context>

<pallas_src>
import jax
import jax.numpy as jnp
from jax.experimental import pallas as pl
from jax.experimental.pallas import tpu as pltpu

_LANE = 128
_VMEM_LIMIT = 48 * 1024 * 1024   # <= 48 MiB: safe on v7x (64 MiB phys), roomy on v5e/v6e


def _ru(x, m):
    return ((x + m - 1) // m) * m


def _pad2(x, rows, cols):
    return jnp.pad(x, ((0, rows - x.shape[0]), (0, cols - x.shape[1])))


def _choose_tiles(n):
    """(tm, tk, n_pad) tiles for the (dst, src) node axes."""
    n_min = _ru(max(n, 1), _LANE)
    if n_min <= 512:
        tm = min(n_min, 256)
        n_pad = _ru(n_min, tm)
        return tm, n_pad, n_pad                 # src axis fits in a single block
    # Large graphs: 512x512 tiles hit ~85% of the HBM streaming roofline; nr >= 2 so the
    # parallel dst-row axis can shard across v7x's two TensorCores.
    n_pad = _ru(n, 512)
    return 512, 512, n_pad


# --------------------------------------------------------------------------------------
# GIN layer: neigh = (A @ h) * (1/deg) ; x = (1+eps)*h + neigh ; out = ReLU(MLP(x))
# Grid: (dst row tiles [parallel], src col tiles [arbitrary reduction]).
# --------------------------------------------------------------------------------------
def gin_layer(adj_i8, inv_deg, h_bf16, eps, ws, bs, *, tm, tk):
    n_pad = adj_i8.shape[0]
    fin = h_bf16.shape[1]
    fout = ws[-1].shape[1]
    num_mlp = len(ws)
    nr, nc = n_pad // tm, n_pad // tk

    def kernel(*refs):
        eps_ref, adj_ref, hs_ref, hd_ref, dg_ref = refs[:5]
        wb_refs = refs[5:5 + 2 * num_mlp]
        out_ref = refs[5 + 2 * num_mlp]
        acc_ref = refs[6 + 2 * num_mlp]
        k = pl.program_id(1)

        @pl.when(k == 0)
        def _():
            acc_ref[...] = jnp.zeros_like(acc_ref)

        # int8 0/1 adjacency -> bf16 cast hides under the DMA (kernel is mem-bound).
        acc_ref[...] += jnp.dot(adj_ref[...].astype(jnp.bfloat16), hs_ref[...],
                                preferred_element_type=jnp.float32)

        @pl.when(k == pl.num_programs(1) - 1)
        def _():
            neigh = acc_ref[...] * dg_ref[...]                       # mean aggregation
            x = (1.0 + eps_ref[0]) * hd_ref[...].astype(jnp.float32) + neigh
            for l in range(num_mlp):
                w = wb_refs[2 * l][...]                               # bf16
                b = wb_refs[2 * l + 1][...]                           # f32
                x = jnp.dot(x.astype(jnp.bfloat16), w,
                            preferred_element_type=jnp.float32) + b
                # ReLU between MLP layers; the final one doubles as the GINConv activation.
                x = jnp.maximum(x, 0.0)
            out_ref[...] = x.astype(out_ref.dtype)                    # bf16 activations out

    wb, wb_specs = [], []
    for w, b in zip(ws, bs):
        wb += [w, b]
        wb_specs += [pl.BlockSpec(w.shape, lambda i, k: (0, 0)),
                     pl.BlockSpec(b.shape, lambda i, k: (0, 0))]

    return pl.pallas_call(
        kernel,
        out_shape=jax.ShapeDtypeStruct((n_pad, fout), jnp.bfloat16),
        grid=(nr, nc),
        in_specs=[
            pl.BlockSpec((1,), lambda i, k: (0,),
                         memory_space=pltpu.MemorySpace.SMEM),       # eps scalar
            pl.BlockSpec((tm, tk), lambda i, k: (i, k)),             # adj (int8)
            pl.BlockSpec((tk, fin), lambda i, k: (k, 0)),            # src features (bf16)
            pl.BlockSpec((tm, fin), lambda i, k: (i, 0)),            # dst features (bf16)
            pl.BlockSpec((tm, 1), lambda i, k: (i, 0)),              # 1/deg (f32)
        ] + wb_specs,
        out_specs=pl.BlockSpec((tm, fout), lambda i, k: (i, 0)),
        scratch_shapes=[pltpu.VMEM((tm, fin), jnp.float32)],
        compiler_params=pltpu.CompilerParams(
            dimension_semantics=("parallel", "arbitrary"),
            vmem_limit_bytes=_VMEM_LIMIT),
    )(eps, adj_i8, h_bf16, h_bf16, inv_deg, *wb)


# --------------------------------------------------------------------------------------
# GAT feature projection: feat = h @ W for ALL heads in one MXU call (row tiled).
# --------------------------------------------------------------------------------------
def linear_project(x_bf16, w_bf16, *, tm):
    n_pad, kin = x_bf16.shape
    kout = w_bf16.shape[1]
    nr = n_pad // tm

    def kernel(x_ref, w_ref, o_ref):
        o_ref[...] = jnp.dot(x_ref[...], w_ref[...],
                             preferred_element_type=jnp.float32).astype(o_ref.dtype)

    return pl.pallas_call(
        kernel,
        out_shape=jax.ShapeDtypeStruct((n_pad, kout), jnp.bfloat16),
        grid=(nr,),
        in_specs=[pl.BlockSpec((tm, kin), lambda i: (i, 0)),
                  pl.BlockSpec((kin, kout), lambda i: (0, 0))],
        out_specs=pl.BlockSpec((tm, kout), lambda i: (i, 0)),
        compiler_params=pltpu.CompilerParams(
            dimension_semantics=("parallel",),
            vmem_limit_bytes=_VMEM_LIMIT),
    )(x_bf16, w_bf16)


# --------------------------------------------------------------------------------------
# GAT attention: flash-style online softmax over src tiles, ALL heads per adjacency tile,
# head mean fused into the epilogue.
# Grid: (dst row tiles [parallel], src col tiles [arbitrary reduction]).
# feat is (N_pad, H * d_pad) bf16; er is (N_pad, H) f32 (dst term); el is (H, N_pad) f32
# (src term); both are precomputed in the wrapper so the inner loop is exp (EUP) + p@fs (MXU).
# --------------------------------------------------------------------------------------
def gat_attention(adj_i8, feat_bf16, er, el, bias, *, num_heads, d_pad, tm, tk):
    n_pad = adj_i8.shape[0]
    nr, nc = n_pad // tm, n_pad // tk
    H = num_heads
    hd = H * d_pad

    def kernel(adj_ref, fs_ref, er_ref, el_ref, b_ref, out_ref, m_sc, l_sc, acc_sc):
        k = pl.program_id(1)

        @pl.when(k == 0)
        def _():
            m_sc[...] = jnp.full_like(m_sc, -1e30)
            l_sc[...] = jnp.zeros_like(l_sc)
            acc_sc[...] = jnp.zeros_like(acc_sc)

        # Adjacency tile shared by all heads; computed once per (i, k).
        a = adj_ref[...].astype(jnp.float32)          # (tm, tk) 0/1
        neg = (a - 1.0) * 1e9                         # 0 on edges, -1e9 on non-edges

        for h in range(H):                            # static unroll over heads
            er_col = er_ref[:, h:h + 1]               # (tm, 1) dst logit term
            el_row = el_ref[h:h + 1, :]               # (1, tk) src logit term
            e = er_col + el_row                       # e[i, j] = er_i + el_j
            e = jnp.where(e > 0, e, 0.2 * e)          # leaky_relu, slope 0.2
            e = e * a + neg                           # mask non-edges (arithmetic, no select)

            m_prev = m_sc[h]
            m_new = jnp.maximum(m_prev, jnp.max(e, axis=1, keepdims=True))
            scale = jnp.exp(m_prev - m_new)
            # The a* factor keeps tiles with NO edge for a row (m_new == -1e9) exactly zero.
            p = a * jnp.exp(e - m_new)
            l_sc[h] = scale * l_sc[h] + jnp.sum(p, axis=1, keepdims=True)
            fs_h = fs_ref[:, h * d_pad:(h + 1) * d_pad]           # (tk, d_pad) bf16
            acc_sc[h] = scale * acc_sc[h] + jnp.dot(
                p.astype(jnp.bfloat16), fs_h, preferred_element_type=jnp.float32)
            m_sc[h] = m_new

        @pl.when(k == pl.num_programs(1) - 1)
        def _():
            acc = jnp.zeros((tm, d_pad), jnp.float32)
            for h in range(H):
                inv = pl.reciprocal(l_sc[h], approx=False)        # exact; epilogue only
                rst = jnp.maximum(acc_sc[h] * inv + b_ref[h:h + 1, :], 0.0)
                acc = acc + rst
            out_ref[...] = (acc * (1.0 / H)).astype(out_ref.dtype)  # head mean, bf16 out

    return pl.pallas_call(
        kernel,
        out_shape=jax.ShapeDtypeStruct((n_pad, d_pad), jnp.bfloat16),
        grid=(nr, nc),
        in_specs=[
            pl.BlockSpec((tm, tk), lambda i, k: (i, k)),          # adj (int8), once per layer
            pl.BlockSpec((tk, hd), lambda i, k: (k, 0)),          # src features, all heads
            pl.BlockSpec((tm, H), lambda i, k: (i, 0)),           # er (dst term, per head cols)
            pl.BlockSpec((H, tk), lambda i, k: (0, k)),           # el (src term, per head rows)
            pl.BlockSpec((H, d_pad), lambda i, k: (0, 0)),        # per-head bias
        ],
        out_specs=pl.BlockSpec((tm, d_pad), lambda i, k: (i, 0)),
        scratch_shapes=[pltpu.VMEM((H, tm, 1), jnp.float32),      # running max, per head
                        pltpu.VMEM((H, tm, 1), jnp.float32),      # running sum, per head
                        pltpu.VMEM((H, tm, d_pad), jnp.float32)], # output accumulator, per head
        compiler_params=pltpu.CompilerParams(
            dimension_semantics=("parallel", "arbitrary"),
            vmem_limit_bytes=_VMEM_LIMIT),
    )(adj_i8, feat_bf16, er, el, bias)


# --------------------------------------------------------------------------------------
# BottomEncoder: parameter container + forward glue (plain JAX)
# --------------------------------------------------------------------------------------
class BottomEncoder:
    def __init__(self, key, in_dim, hid_dim, out_dim, num_gin, num_gat,
                 num_mlp_layers, init_eps=0.0, num_heads=8, out_type="concat"):
        if out_type not in ("mean", "concat", "final"):
            raise KeyError(f"Not supported output type {out_type}")
        self.out_type = out_type
        self.num_heads = num_heads
        self.in_dim = in_dim

        in_p, hid_p, out_p = _ru(in_dim, _LANE), _ru(hid_dim, _LANE), _ru(out_dim, _LANE)

        # GIN layers (weights/biases zero-padded to 128-lane feature dims; math unchanged)
        self.gin_params = []
        gin_dims = [(in_dim, in_p)] + [(hid_dim, hid_p)] * num_gin
        for (d1, d1p), (d2, d2p) in zip(gin_dims[:-1], gin_dims[1:]):
            layer_dims = [((d1, d1p), (d2, d2p))] + [((d2, d2p), (d2, d2p))] * (num_mlp_layers - 1)
            ws, bs = [], []
            for (a, ap), (b, bp) in layer_dims:
                key, kw, kb = jax.random.split(key, 3)
                w = 0.1 * jax.random.normal(kw, (a, b), jnp.float32)
                bias = 0.01 * jax.random.normal(kb, (1, b), jnp.float32)
                ws.append(_pad2(w, ap, bp).astype(jnp.bfloat16))
                bs.append(_pad2(bias, 1, bp))
            self.gin_params.append(dict(eps=jnp.array([init_eps], jnp.float32),
                                        ws=ws, bs=bs, out_dim=d2))

        # GAT layers
        self.gat_params = []
        gat_dims = [(hid_dim, hid_p)] * num_gat + [(out_dim, out_p)]
        for (d1, d1p), (d2, d2p) in zip(gat_dims[:-1], gat_dims[1:]):
            key, kw, kl, kr, kb = jax.random.split(key, 5)
            w = 0.1 * jax.random.normal(kw, (d1, num_heads, d2), jnp.float32)
            w_pad = jnp.zeros((d1p, num_heads, d2p), jnp.float32).at[:d1, :, :d2].set(w)
            attn_l = 0.1 * jax.random.normal(kl, (num_heads, d2), jnp.float32)
            attn_r = 0.1 * jax.random.normal(kr, (num_heads, d2), jnp.float32)
            bias = 0.01 * jax.random.normal(kb, (num_heads, d2), jnp.float32)
            self.gat_params.append(dict(
                w=w_pad.reshape(d1p, num_heads * d2p).astype(jnp.bfloat16),
                attn_l=_pad2(attn_l, num_heads, d2p),      # (H, d_pad) f32
                attn_r=_pad2(attn_r, num_heads, d2p),      # (H, d_pad) f32
                bias=_pad2(bias, num_heads, d2p),          # (H, d_pad) f32
                out_dim=d2, out_pad=d2p))

    def __call__(self, adj_no_self, h):
        n = adj_no_self.shape[0]
        tm, tk, n_pad = _choose_tiles(n)
        H = self.num_heads

        # dgl.add_self_loop; int8 adjacency directly (no f32 N^2 intermediate). Padded rows
        # also get a self loop so degree >= 1 and the per-row softmax stays well defined;
        # real rows never attend to padded src columns (those stay zero).
        adj = jnp.zeros((n_pad, n_pad), jnp.int8).at[:n, :n].set(adj_no_self.astype(jnp.int8))
        adj = jnp.maximum(adj, jnp.eye(n_pad, dtype=jnp.int8))
        inv_deg = 1.0 / jnp.sum(adj, axis=1, dtype=jnp.float32, keepdims=True)

        in_p = _ru(self.in_dim, _LANE)
        h_pad = jnp.zeros((n_pad, in_p), jnp.float32).at[:n, :self.in_dim].set(h)
        x = h_pad.astype(jnp.bfloat16)          # bf16 activations throughout the stack

        # TODO(synk): the adjacency is re-streamed from HBM once per layer; a fully fused
        # multi-layer kernel would remove (L-1) adjacency reads for very large graphs.
        outputs = []
        for p in self.gin_params:
            x = gin_layer(adj, inv_deg, x, p["eps"], p["ws"], p["bs"], tm=tm, tk=tk)
            outputs.append(x[:n, :p["out_dim"]].astype(jnp.float32))

        for p in self.gat_params:
            d_pad = p["out_pad"]
            feat = linear_project(x, p["w"], tm=tm)                 # (N_pad, H*d_pad) bf16
            fhd = feat.reshape(n_pad, H, d_pad)
            # Precompute the attention logit terms (tiny vs the N^2 adjacency stream).
            er = jnp.einsum('nhd,hd->nh', fhd, p["attn_r"].astype(jnp.bfloat16),
                            preferred_element_type=jnp.float32)     # (N_pad, H)
            el = jnp.einsum('nhd,hd->hn', fhd, p["attn_l"].astype(jnp.bfloat16),
                            preferred_element_type=jnp.float32)     # (H, N_pad)
            x = gat_attention(adj, feat, er, el, p["bias"], num_heads=H,
                              d_pad=d_pad, tm=tm, tk=tk)            # head-mean fused, bf16
            outputs.append(x[:n, :p["out_dim"]].astype(jnp.float32))

        if self.out_type == "mean":
            return jnp.mean(jnp.stack(outputs, axis=-1), axis=-1)
        elif self.out_type == "concat":
            return jnp.concatenate(outputs, axis=-1)
        else:
            return outputs[-1]


if __name__ == "__main__":
    key = jax.random.PRNGKey(0)
    k_graph, k_feat, k_params = jax.random.split(key, 3)

    # small synthetic problem
    N, IN_DIM, HID_DIM, OUT_DIM = 16, 8, 16, 32
    NUM_GIN, NUM_GAT, NUM_MLP, NUM_HEADS = 2, 2, 2, 4

    # random directed graph (no self loops; encoder adds them), dense adjacency adj[dst, src]
    adj_no_self = (jax.random.uniform(k_graph, (N, N)) < 0.3).astype(jnp.float32)
    adj_no_self = adj_no_self * (1.0 - jnp.eye(N, dtype=jnp.float32))
    h = jax.random.normal(k_feat, (N, IN_DIM), jnp.float32)

    enc = BottomEncoder(k_params, IN_DIM, HID_DIM, OUT_DIM, NUM_GIN, NUM_GAT,
                        NUM_MLP, init_eps=0.0, num_heads=NUM_HEADS, out_type="concat")

    out = enc(adj_no_self, h)
    jax.block_until_ready(out)

    expected_dim = HID_DIM * NUM_GIN + HID_DIM * (NUM_GAT - 1) + OUT_DIM
    assert out.shape == (N, expected_dim), out.shape
    assert bool(jnp.all(jnp.isfinite(out)))
    print("KERNEL_OK")
</pallas_src>

<mosaic_0001>
module attributes {stable_mosaic.version = 11 : i64} {
  func.func @kernel(%arg0: i32, %arg1: i32, %arg2: memref<1xf32, #tpu.memory_space<smem>>, %arg3: memref<128x128xi8, #tpu.memory_space<vmem>>, %arg4: memref<128x128xbf16, #tpu.memory_space<vmem>>, %arg5: memref<128x128xbf16, #tpu.memory_space<vmem>>, %arg6: memref<128x1xf32, #tpu.memory_space<vmem>>, %arg7: memref<128x128xbf16, #tpu.memory_space<vmem>>, %arg8: memref<1x128xf32, #tpu.memory_space<vmem>>, %arg9: memref<128x128xbf16, #tpu.memory_space<vmem>>, %arg10: memref<1x128xf32, #tpu.memory_space<vmem>>, %arg11: memref<128x128xbf16, #tpu.memory_space<vmem>>, %arg12: memref<128x128xf32, #tpu.memory_space<vmem>>) attributes {dimension_semantics = [#tpu.dimension_semantics<parallel>, #tpu.dimension_semantics<arbitrary>], iteration_bounds = array<i64: 1, 1>, scalar_prefetch = 0 : i64, scratch_operands = 1 : i64, tpu.core_type = #tpu.core_type<tc>, window_params = [{transform_indices = @transform_0, window_bounds = array<i64: 1>}, {transform_indices = @transform_1, window_bounds = array<i64: 128, 128>}, {transform_indices = @transform_2, window_bounds = array<i64: 128, 128>}, {transform_indices = @transform_3, window_bounds = array<i64: 128, 128>}, {transform_indices = @transform_4, window_bounds = array<i64: 128, 1>}, {pipeline_mode = #tpu.pipeline_mode<synchronous>, transform_indices = @transform_5, window_bounds = array<i64: 128, 128>}, {pipeline_mode = #tpu.pipeline_mode<synchronous>, transform_indices = @transform_6, window_bounds = array<i64: 1, 128>}, {pipeline_mode = #tpu.pipeline_mode<synchronous>, transform_indices = @transform_7, window_bounds = array<i64: 128, 128>}, {pipeline_mode = #tpu.pipeline_mode<synchronous>, transform_indices = @transform_8, window_bounds = array<i64: 1, 128>}, {transform_indices = @transform_9, window_bounds = array<i64: 128, 128>}]} {
    %c0_i32 = arith.constant 0 : i32
    %0 = arith.cmpi eq, %arg1, %c0_i32 : i32
    %1 = arith.extui %0 : i1 to i32
    %c0_i32_0 = arith.constant 0 : i32
    %2 = arith.cmpi ne, %1, %c0_i32_0 : i32
    scf.if %2 {
      %cst_10 = arith.constant 0.000000e+00 : f32
      %13 = vector.broadcast %cst_10 : f32 to vector<128x128xf32>
      %c0_11 = arith.constant 0 : index
      %c0_12 = arith.constant 0 : index
      %14 = vector.load %arg12[%c0_11, %c0_12] : memref<128x128xf32, #tpu.memory_space<vmem>>, vector<128x128xf32>
      tpu.vector_store %arg12[%c0_11, %c0_12], %13 {strides = array<i32>} : memref<128x128xf32, #tpu.memory_space<vmem>>, vector<128x128xf32>,
    } else {
    }
    %c0 = arith.constant 0 : index
    %c0_1 = arith.constant 0 : index
    %3 = vector.load %arg12[%c0, %c0_1] : memref<128x128xf32, #tpu.memory_space<vmem>>, vector<128x128xf32>
    %c0_2 = arith.constant 0 : index
    %c0_3 = arith.constant 0 : index
    %4 = vector.load %arg3[%c0_2, %c0_3] : memref<128x128xi8, #tpu.memory_space<vmem>>, vector<128x128xi8>
    %5 = arith.sitofp %4 : vector<128x128xi8> to vector<128x128xbf16>
    %c0_4 = arith.constant 0 : index
    %c0_5 = arith.constant 0 : index
    %6 = vector.load %arg4[%c0_4, %c0_5] : memref<128x128xbf16, #tpu.memory_space<vmem>>, vector<128x128xbf16>
    %cst = arith.constant dense<0.000000e+00> : vector<128x128xf32>
    %7 = tpu.matmul %5, %6, %cst {dimension_numbers = #tpu.dot_dimension_numbers<[1], [0], [0], [1], [0, 0, 1, 1], [], []>} : vector<128x128xbf16>, vector<128x128xbf16>, vector<128x128xf32> -> vector<128x128xf32>
    %8 = arith.addf %3, %7 : vector<128x128xf32>
    %c0_6 = arith.constant 0 : index
    %c0_7 = arith.constant 0 : index
    %9 = vector.load %arg12[%c0_6, %c0_7] : memref<128x128xf32, #tpu.memory_space<vmem>>, vector<128x128xf32>
    tpu.vector_store %arg12[%c0_6, %c0_7], %8 {strides = array<i32>} : memref<128x128xf32, #tpu.memory_space<vmem>>, vector<128x128xf32>,
    %c0_i32_8 = arith.constant 0 : i32
    %10 = arith.cmpi eq, %arg1, %c0_i32_8 : i32
    %11 = arith.extui %10 : i1 to i32
    %c0_i32_9 = arith.constant 0 : i32
    %12 = arith.cmpi ne, %11, %c0_i32_9 : i32
    scf.if %12 {
      %c0_10 = arith.constant 0 : index
      %c0_11 = arith.constant 0 : index
      %13 = vector.load %arg12[%c0_10, %c0_11] : memref<128x128xf32, #tpu.memory_space<vmem>>, vector<128x128xf32>
      %c0_12 = arith.constant 0 : index
      %c0_13 = arith.constant 0 : index
      %14 = vector.load %arg6[%c0_12, %c0_13] : memref<128x1xf32, #tpu.memory_space<vmem>>, vector<128x1xf32>
      %15 = vector.broadcast %14 : vector<128x1xf32> to vector<128x128xf32>
      %16 = arith.mulf %13, %15 : vector<128x128xf32>
      %c0_14 = arith.constant 0 : index
      %17 = memref.load %arg2[%c0_14] : memref<1xf32, #tpu.memory_space<smem>>
      %cst_15 = arith.constant 1.000000e+00 : f32
      %18 = arith.addf %cst_15, %17 : f32
      %c0_16 = arith.constant 0 : index
      %c0_17 = arith.constant 0 : index
      %19 = vector.load %arg5[%c0_16, %c0_17] : memref<128x128xbf16, #tpu.memory_space<vmem>>, vector<128x128xbf16>
      %20 = arith.extf %19 : vector<128x128xbf16> to vector<128x128xf32>
      %21 = vector.broadcast %18 : f32 to vector<128x128xf32>
      %22 = arith.mulf %21, %20 : vector<128x128xf32>
      %23 = arith.addf %22, %16 : vector<128x128xf32>
      %c0_18 = arith.constant 0 : index
      %c0_19 = arith.constant 0 : index
      %24 = vector.load %arg7[%c0_18, %c0_19] : memref<128x128xbf16, #tpu.memory_space<vmem>>, vector<128x128xbf16>
      %c0_20 = arith.constant 0 : index
      %c0_21 = arith.constant 0 : index
      %25 = vector.load %arg8[%c0_20, %c0_21] : memref<1x128xf32, #tpu.memory_space<vmem>>, vector<1x128xf32>
      %26 = arith.truncf %23 : vector<128x128xf32> to vector<128x128xbf16>
      %cst_22 = arith.constant dense<0.000000e+00> : vector<128x128xf32>
      %27 = tpu.matmul %26, %24, %cst_22 {dimension_numbers = #tpu.dot_dimension_numbers<[1], [0], [0], [1], [0, 0, 1, 1], [], []>} : vector<128x128xbf16>, vector<128x128xbf16>, vector<128x128xf32> -> vector<128x128xf32>
      %28 = vector.broadcast %25 : vector<1x128xf32> to vector<128x128xf32>
      %29 = arith.addf %27, %28 : vector<128x128xf32>
      %cst_23 = arith.constant 0.000000e+00 : f32
      %30 = vector.broadcast %cst_23 : f32 to vector<128x128xf32>
      %31 = arith.maximumf %29, %30 : vector<128x128xf32>
      %c0_24 = arith.constant 0 : index
      %c0_25 = arith.constant 0 : index
      %32 = vector.load %arg9[%c0_24, %c0_25] : memref<128x128xbf16, #tpu.memory_space<vmem>>, vector<128x128xbf16>
      %c0_26 = arith.constant 0 : index
      %c0_27 = arith.constant 0 : index
      %33 = vector.load %arg10[%c0_26, %c0_27] : memref<1x128xf32, #tpu.memory_space<vmem>>, vector<1x128xf32>
      %34 = arith.truncf %31 : vector<128x128xf32> to vector<128x128xbf16>
      %cst_28 = arith.constant dense<0.000000e+00> : vector<128x128xf32>
      %35 = tpu.matmul %34, %32, %cst_28 {dimension_numbers = #tpu.dot_dimension_numbers<[1], [0], [0], [1], [0, 0, 1, 1], [], []>} : vector<128x128xbf16>, vector<128x128xbf16>, vector<128x128xf32> -> vector<128x128xf32>
      %36 = vector.broadcast %33 : vector<1x128xf32> to vector<128x128xf32>
      %37 = arith.addf %35, %36 : vector<128x128xf32>
      %cst_29 = arith.constant 0.000000e+00 : f32
      %38 = vector.broadcast %cst_29 : f32 to vector<128x128xf32>
      %39 = arith.maximumf %37, %38 : vector<128x128xf32>
      %40 = arith.truncf %39 : vector<128x128xf32> to vector<128x128xbf16>
      %c0_30 = arith.constant 0 : index
      %c0_31 = arith.constant 0 : index
      %41 = vector.load %arg11[%c0_30, %c0_31] : memref<128x128xbf16, #tpu.memory_space<vmem>>, vector<128x128xbf16>
      tpu.vector_store %arg11[%c0_30, %c0_31], %40 {strides = array<i32>} : memref<128x128xbf16, #tpu.memory_space<vmem>>, vector<128x128xbf16>,
    } else {
    }
    return
  }
  func.func @transform_0(%arg0: i32, %arg1: i32) -> i32 {
    %c0_i32 = arith.constant 0 : i32
    %c0_i32_0 = arith.constant 0 : i32
    return %c0_i32 : i32
  }
  func.func @transform_1(%arg0: i32, %arg1: i32) -> (i32, i32) {
    %c0_i32 = arith.constant 0 : i32
    return %arg0, %arg1 : i32, i32
  }
  func.func @transform_2(%arg0: i32, %arg1: i32) -> (i32, i32) {
    %c0_i32 = arith.constant 0 : i32
    %c0_i32_0 = arith.constant 0 : i32
    return %arg1, %c0_i32 : i32, i32
  }
  func.func @transform_3(%arg0: i32, %arg1: i32) -> (i32, i32) {
    %c0_i32 = arith.constant 0 : i32
    %c0_i32_0 = arith.constant 0 : i32
    return %arg0, %c0_i32 : i32, i32
  }
  func.func @transform_4(%arg0: i32, %arg1: i32) -> (i32, i32) {
    %c0_i32 = arith.constant 0 : i32
    %c0_i32_0 = arith.constant 0 : i32
    return %arg0, %c0_i32 : i32, i32
  }
  func.func @transform_5(%arg0: i32, %arg1: i32) -> (i32, i32) {
    %c0_i32 = arith.constant 0 : i32
    %c0_i32_0 = arith.constant 0 : i32
    %c0_i32_1 = arith.constant 0 : i32
    return %c0_i32, %c0_i32_0 : i32, i32
  }
  func.func @transform_6(%arg0: i32, %arg1: i32) -> (i32, i32) {
    %c0_i32 = arith.constant 0 : i32
    %c0_i32_0 = arith.constant 0 : i32
    %c0_i32_1 = arith.constant 0 : i32
    return %c0_i32, %c0_i32_0 : i32, i32
  }
  func.func @transform_7(%arg0: i32, %arg1: i32) -> (i32, i32) {
    %c0_i32 = arith.constant 0 : i32
    %c0_i32_0 = arith.constant 0 : i32
    %c0_i32_1 = arith.constant 0 : i32
    return %c0_i32, %c0_i32_0 : i32, i32
  }
  func.func @transform_8(%arg0: i32, %arg1: i32) -> (i32, i32) {
    %c0_i32 = arith.constant 0 : i32
    %c0_i32_0 = arith.constant 0 : i32
    %c0_i32_1 = arith.constant 0 : i32
    return %c0_i32, %c0_i32_0 : i32, i32
  }
  func.func @transform_9(%arg0: i32, %arg1: i32) -> (i32, i32) {
    %c0_i32 = arith.constant 0 : i32
    %c0_i32_0 = arith.constant 0 : i32
    return %arg0, %c0_i32 : i32, i32
  }
}

</mosaic_0001>

<llo_original>
// kernel: tpu_custom_call.1
$region0: #{tpu_custom_call.1}
  #allocation0 [shape = 'u32[]', space=smem, size = 0x4, offset = 0x4, fixed_abs, tag = 'smem constant byte address 0x4 - core index']
  #allocation1 [shape = 'u32[144,128]{1,0:T(1,128)}', space=vmem, size = 0x12000, scoped, tag = 'internal scratch']
  #allocation2 [shape = 'f32[128,128]{1,0:T(8,128)}', space=vmem, size = 0x10000, scoped, tag = 'scratch operand']
  #allocation3 [shape = 'f32[1]{0:T(128)S(6)}', space=smem, size = 0x200, scoped, tag = 'scoped memory for tpu_custom_call.1']
  %s0 = inlined_call_operand.<no memory space> [shape: f32[1], index: 0, kind: input, shape index: {}]
  %s1 = inlined_call_operand.hbm [shape: s8[128,128], index: 1, kind: input, shape index: {}]
  %s2 = inlined_call_operand.vmem [shape: bf16[128,128], index: 2, kind: input, shape index: {}]
  %s3 = inlined_call_operand.vmem [shape: bf16[128,128], index: 3, kind: input, shape index: {}]
  %s4 = inlined_call_operand.vmem [shape: f32[128,1], index: 4, kind: input, shape index: {}]
  %s5 = inlined_call_operand.hbm [shape: bf16[128,128], index: 5, kind: input, shape index: {}]
  %s6 = inlined_call_operand.vmem [shape: f32[1,128], index: 6, kind: input, shape index: {}]
  %s7 = inlined_call_operand.hbm [shape: bf16[128,128], index: 7, kind: input, shape index: {}]
  %s8 = inlined_call_operand.vmem [shape: f32[1,128], index: 8, kind: input, shape index: {}]
  %s9 = inlined_call_operand.hbm [shape: bf16[128,128], index: 9, kind: output, shape index: {}]
  %s10 = sld [smem:[#allocation0]]
  $region66: #{tpu_custom_call.1} parent=0
    _
  %s12 = ssub.s32 1, %s10
  %s13 = scalar_select 0, %s12, %s10
  %14 = sst [smem:[#allocation3]] %s0
  $region1: #{tpu_custom_call.1} parent=0
    #allocation4 [shape = 'u8[16384]{0}', space=vmem, size = 0x4000, scoped, tag = 'input window, operand 1, single buffered']
    #allocation5 [shape = 's32[1]{0}', space=sflag, size = 0x4, scoped, tag = 'scoped memory for tpu_custom_call.1']
    #allocation6 [shape = 's32[1]{0}', space=sflag, size = 0x4, scoped, tag = 'scoped memory for tpu_custom_call.1']
    #allocation7 [shape = 'u8[32768]{0}', space=vmem, size = 0x8000, scoped, tag = 'input window, operand 5, single buffered']
    #allocation8 [shape = 's32[1]{0}', space=sflag, size = 0x4, scoped, tag = 'scoped memory for tpu_custom_call.1']
    #allocation9 [shape = 'u8[32768]{0}', space=vmem, size = 0x8000, scoped, tag = 'input window, operand 7, single buffered']
    #allocation10 [shape = 'u8[32768]{0}', space=vmem, size = 0x8000, scoped, tag = 'output window, operand 0, single buffered']
    %15 = vsyncpa [#allocation5], 0
    %16 = vsyncpa [#allocation8], 0
    %17 = vsyncpa [#allocation6], 0
    // Predicated region
    $region2: #{tpu_custom_call.1} parent=1 // pred_check
      _
    $region3: #{tpu_custom_call.1} parent=1 // pred_check_branch
      %19 = sbr.rel (0) target = $region5
    $region4: #{tpu_custom_call.1} parent=1 // pred_region
      _
    $region5: #{tpu_custom_call.1} parent=1 // pred_fallthru
      _
    // Predicated region
    $region6: #{tpu_custom_call.1} parent=1 // pred_check
      _
    $region7: #{tpu_custom_call.1} parent=1 // pred_check_branch
      %21 = sbr.rel (0) target = $region9
    $region8: #{tpu_custom_call.1} parent=1 // pred_region
      %s23 = ssub.s32 512, 512
      %24 = vsyncadd [#allocation5], %s23
      %s25 = sshll.u32 [#allocation4], 4
      %s26 = int_to_ptr.vmem [resolvable:$true] %s25
      %31 = dma.hbm_to_vmem [thread:$0]  %s1, 512, %s26, [#allocation5], 128, 128, 8
    $region9: #{tpu_custom_call.1} parent=1 // pred_fallthru
      _
    // Predicated region
    $region10: #{tpu_custom_call.1} parent=1 // pred_check
      _
    $region11: #{tpu_custom_call.1} parent=1 // pred_check_branch
      %33 = sbr.rel (0) target = $region13
    $region12: #{tpu_custom_call.1} parent=1 // pred_region
      _
    $region13: #{tpu_custom_call.1} parent=1 // pred_fallthru
      _
    // Predicated region
    $region14: #{tpu_custom_call.1} parent=1 // pred_check
      _
    $region15: #{tpu_custom_call.1} parent=1 // pred_check_branch
      %35 = sbr.rel (0) target = $region17
    $region16: #{tpu_custom_call.1} parent=1 // pred_region
      _
    $region17: #{tpu_custom_call.1} parent=1 // pred_fallthru
      _
    // Predicated region
    $region18: #{tpu_custom_call.1} parent=1 // pred_check
      _
    $region19: #{tpu_custom_call.1} parent=1 // pred_check_branch
      %37 = sbr.rel (0) target = $region21
    $region20: #{tpu_custom_call.1} parent=1 // pred_region
      _
    $region21: #{tpu_custom_call.1} parent=1 // pred_fallthru
      _
    // Predicated region
    $region22: #{tpu_custom_call.1} parent=1 // pred_check
      _
    $region23: #{tpu_custom_call.1} parent=1 // pred_check_branch
      %39 = sbr.rel (0) target = $region25
    $region24: #{tpu_custom_call.1} parent=1 // pred_region
      %s41 = ssub.s32 1024, 1024
      %42 = vsyncadd [#allocation8], %s41
      %s43 = sshll.u32 [#allocation7], 4
      %s44 = int_to_ptr.vmem [resolvable:$true] %s43
      %49 = dma.hbm_to_vmem [thread:$0]  %s5, 1024, %s44, [#allocation8], 64, 64, 4
    $region25: #{tpu_custom_call.1} parent=1 // pred_fallthru
      _
    // Predicated region
    $region26: #{tpu_custom_call.1} parent=1 // pred_check
      _
    $region27: #{tpu_custom_call.1} parent=1 // pred_check_branch
      %51 = sbr.rel (0) target = $region29
    $region28: #{tpu_custom_call.1} parent=1 // pred_region
      _
    $region29: #{tpu_custom_call.1} parent=1 // pred_fallthru
      _
    // Predicated region
    $region30: #{tpu_custom_call.1} parent=1 // pred_check
      _
    $region31: #{tpu_custom_call.1} parent=1 // pred_check_branch
      %53 = sbr.rel (0) target = $region33
    $region32: #{tpu_custom_call.1} parent=1 // pred_region
      %s55 = ssub.s32 1024, 1024
      %56 = vsyncadd [#allocation8], %s55
      %s57 = sshll.u32 [#allocation9], 4
      %s58 = int_to_ptr.vmem [resolvable:$true] %s57
      %63 = dma.hbm_to_vmem [thread:$0]  %s7, 1024, %s58, [#allocation8], 64, 64, 4
    $region33: #{tpu_custom_call.1} parent=1 // pred_fallthru
      _
    // Predicated region
    $region34: #{tpu_custom_call.1} parent=1 // pred_check
      _
    $region35: #{tpu_custom_call.1} parent=1 // pred_check_branch
      %65 = sbr.rel (0) target = $region37
    $region36: #{tpu_custom_call.1} parent=1 // pred_region
      _
    $region37: #{tpu_custom_call.1} parent=1 // pred_fallthru
      _
    // Predicated region
    $region38: #{tpu_custom_call.1} parent=1 // pred_check
      _
    $region39: #{tpu_custom_call.1} parent=1 // pred_check_branch
      %67 = sbr.rel (0) target = $region41
    $region40: #{tpu_custom_call.1} parent=1 // pred_region
      %68 = dma.done [#allocation5], 512
    $region41: #{tpu_custom_call.1} parent=1 // pred_fallthru
      _
    // Predicated region
    $region42: #{tpu_custom_call.1} parent=1 // pred_check
      _
    $region43: #{tpu_custom_call.1} parent=1 // pred_check_branch
      %70 = sbr.rel (0) target = $region45
    $region44: #{tpu_custom_call.1} parent=1 // pred_region
      %71 = dma.done [#allocation8], 1024
    $region45: #{tpu_custom_call.1} parent=1 // pred_fallthru
      _
    // Predicated region
    $region46: #{tpu_custom_call.1} parent=1 // pred_check
      _
    $region47: #{tpu_custom_call.1} parent=1 // pred_check_branch
      %73 = sbr.rel (0) target = $region49
    $region48: #{tpu_custom_call.1} parent=1 // pred_region
      %74 = dma.done [#allocation8], 1024
    $region49: #{tpu_custom_call.1} parent=1 // pred_fallthru
      _
    %p76 = scmp.eq.s32.totalorder 0, 0
    // Predicated region
    $region50: #{tpu_custom_call.1} parent=1 // pred_check
      %p77 = pneg %p76
    $region51: #{tpu_custom_call.1} parent=1 // pred_check_branch
      %79 = sbr.rel (%p77) target = $region53
    $region52: #{tpu_custom_call.1} parent=1 // pred_region
      %80 = vst [vmem:[#allocation2] sm:$0xff] 0.0
      %81 = vst [vmem:[#allocation2 + $0x8] sm:$0xff] 0.0
      %82 = vst [vmem:[#allocation2 + $0x10] sm:$0xff] 0.0
      %83 = vst [vmem:[#allocation2 + $0x18] sm:$0xff] 0.0
      %84 = vst [vmem:[#allocation2 + $0x20] sm:$0xff] 0.0
      %85 = vst [vmem:[#allocation2 + $0x28] sm:$0xff] 0.0
      %86 = vst [vmem:[#allocation2 + $0x30] sm:$0xff] 0.0
      %87 = vst [vmem:[#allocation2 + $0x38] sm:$0xff] 0.0
      %88 = vst [vmem:[#allocation2 + $0x40] sm:$0xff] 0.0
      %89 = vst [vmem:[#allocation2 + $0x48] sm:$0xff] 0.0
      %90 = vst [vmem:[#allocation2 + $0x50] sm:$0xff] 0.0
      %91 = vst [vmem:[#allocation2 + $0x58] sm:$0xff] 0.0
      %92 = vst [vmem:[#allocation2 + $0x60] sm:$0xff] 0.0
      %93 = vst [vmem:[#allocation2 + $0x68] sm:$0xff] 0.0
      %94 = vst [vmem:[#allocation2 + $0x70] sm:$0xff] 0.0
      %95 = vst [vmem:[#allocation2 + $0x78] sm:$0xff] 0.0
    $region53: #{tpu_custom_call.1} parent=1 // pred_fallthru
      _
    %v96 = vld [vmem:[#allocation2] sm:$0xff]
    %v97 = vld [vmem:[#allocation2 + $0x8] sm:$0xff]
    %v98 = vld [vmem:[#allocation2 + $0x10] sm:$0xff]
    %v99 = vld [vmem:[#allocation2 + $0x18] sm:$0xff]
    %v100 = vld [vmem:[#allocation2 + $0x20] sm:$0xff]
    %v101 = vld [vmem:[#allocation2 + $0x28] sm:$0xff]
    %v102 = vld [vmem:[#allocation2 + $0x30] sm:$0xff]
    %v103 = vld [vmem:[#allocation2 + $0x38] sm:$0xff]
    %v104 = vld [vmem:[#allocation2 + $0x40] sm:$0xff]
    %v105 = vld [vmem:[#allocation2 + $0x48] sm:$0xff]
    %v106 = vld [vmem:[#allocation2 + $0x50] sm:$0xff]
    %v107 = vld [vmem:[#allocation2 + $0x58] sm:$0xff]
    %v108 = vld [vmem:[#allocation2 + $0x60] sm:$0xff]
    %v109 = vld [vmem:[#allocation2 + $0x68] sm:$0xff]
    %v110 = vld [vmem:[#allocation2 + $0x70] sm:$0xff]
    %v111 = vld [vmem:[#allocation2 + $0x78] sm:$0xff]
    %v112 = vld [vmem:[#allocation4] sm:$0xff]
    %v113 = vld [vmem:[#allocation4 + $0x8] sm:$0xff]
    %v114 = vld [vmem:[#allocation4 + $0x10] sm:$0xff]
    %v115 = vld [vmem:[#allocation4 + $0x18] sm:$0xff]
    %v116 = vunpack.c.l.s8.bf16 %v112
    %v117 = vunpack.c.h.s8.bf16 %v112
    %v118 = vunpack.c.l.s8.bf16 %v113
    %v119 = vunpack.c.h.s8.bf16 %v113
    %v120 = vunpack.c.l.s8.bf16 %v114
    %v121 = vunpack.c.h.s8.bf16 %v114
    %v122 = vunpack.c.l.s8.bf16 %v115
    %v123 = vunpack.c.h.s8.bf16 %v115
    %v124 = vld [vmem:[%s2] sm:$0xf]
    %v125 = vld [vmem:[%s2 + $0x4] sm:$0xf]
    %v126 = vld [vmem:[%s2 + $0x8] sm:$0xf]
    %v127 = vld [vmem:[%s2 + $0xc] sm:$0xf]
    %v128 = vld [vmem:[%s2 + $0x10] sm:$0xf]
    %v129 = vld [vmem:[%s2 + $0x14] sm:$0xf]
    %v130 = vld [vmem:[%s2 + $0x18] sm:$0xf]
    %v131 = vld [vmem:[%s2 + $0x1c] sm:$0xf]
    %v132 = vld [vmem:[%s2 + $0x20] sm:$0xf]
    %v133 = vld [vmem:[%s2 + $0x24] sm:$0xf]
    %v134 = vld [vmem:[%s2 + $0x28] sm:$0xf]
    %v135 = vld [vmem:[%s2 + $0x2c] sm:$0xf]
    %v136 = vld [vmem:[%s2 + $0x30] sm:$0xf]
    %v137 = vld [vmem:[%s2 + $0x34] sm:$0xf]
    %v138 = vld [vmem:[%s2 + $0x38] sm:$0xf]
    %v139 = vld [vmem:[%s2 + $0x3c] sm:$0xf]
    %v156 = vunpack.c.l.b16 %v124
    %v157 = vunpack.c.l.b16 %v125
    %v158 = vunpack.c.l.b16 %v126
    %v159 = vunpack.c.l.b16 %v127
    %v160 = vunpack.c.l.b16 %v128
    %v161 = vunpack.c.l.b16 %v129
    %v162 = vunpack.c.l.b16 %v130
    %v163 = vunpack.c.l.b16 %v131
    %v164 = vunpack.c.l.b16 %v132
    %v165 = vunpack.c.l.b16 %v133
    %v166 = vunpack.c.l.b16 %v134
    %v167 = vunpack.c.l.b16 %v135
    %v168 = vunpack.c.l.b16 %v136
    %v169 = vunpack.c.l.b16 %v137
    %v170 = vunpack.c.l.b16 %v138
    %v171 = vunpack.c.l.b16 %v139
    %v172 = vpack.c.b16 %v157, %v156
    %v173 = vpack.c.b16 %v159, %v158
    %v174 = vpack.c.b16 %v161, %v160
    %v175 = vpack.c.b16 %v163, %v162
    %v176 = vpack.c.b16 %v165, %v164
    %v177 = vpack.c.b16 %v167, %v166
    %v178 = vpack.c.b16 %v169, %v168
    %v179 = vpack.c.b16 %v171, %v170
    %188 = vmatprep.subr.bf16.mxu0 0
    %189 = vmatpush1.bf16.msra.mxu0 %v179
    %190 = vmatprep.subr.bf16.mxu0 0
    %191 = vmatpush1.bf16.msra.mxu0 %v178
    %192 = vmatprep.subr.bf16.mxu0 0
    %193 = vmatpush1.bf16.msra.mxu0 %v177
    %194 = vmatprep.subr.bf16.mxu0 0
    %195 = vmatpush1.bf16.msra.mxu0 %v176
    %196 = vmatprep.subr.bf16.mxu0 0
    %197 = vmatpush1.bf16.msra.mxu0 %v175
    %198 = vmatprep.subr.bf16.mxu0 0
    %199 = vmatpush1.bf16.msra.mxu0 %v174
    %200 = vmatprep.subr.bf16.mxu0 0
    %201 = vmatpush1.bf16.msra.mxu0 %v173
    %202 = vmatprep.subr.bf16.mxu0 0
    %203 = vmatpush1.bf16.msra.mxu0 %v172
    %204 = vmatprep.subr.bf16.mxu0 0
    %205 = vmatpush2.bf16.msra.mxu0 0
    %206 = vmatprep.subr.bf16.mxu0 0
    %207 = vmatpush2.bf16.msra.mxu0 0
    %208 = vmatprep.subr.bf16.mxu0 0
    %209 = vmatpush2.bf16.msra.mxu0 0
    %210 = vmatprep.subr.bf16.mxu0 0
    %211 = vmatpush2.bf16.msra.mxu0 0
    %212 = vmatprep.subr.bf16.mxu0 0
    %213 = vmatpush2.bf16.msra.mxu0 0
    %214 = vmatprep.subr.bf16.mxu0 0
    %215 = vmatpush2.bf16.msra.mxu0 0
    %216 = vmatprep.subr.bf16.mxu0 0
    %217 = vmatpush2.bf16.msra.mxu0 0
    %218 = vmatprep.subr.bf16.mxu0 0
    %219 = vmatpush2.bf16.msra.mxu0 0
    %220 = vmatprep.mubr.bf16.mxu0 0
    %221 = vmatmul.mubr.bf16.gmra.mxu0 %v116
    %v222 = vpop.f32.mrf.mxu0
    %v223 = vadd.f32 0.0, %v222
    %v224 = vpop.f32.mrf.mxu0
    %v225 = vpop.f32.mrf.mxu0
    %v226 = vadd.f32 0.0, %v225
    %v227 = vpop.f32.mrf.mxu0
    %228 = vmatprep.mubr.bf16.mxu0 0
    %229 = vmatmul.mubr.bf16.gmra.mxu0 %v117
    %v230 = vpop.f32.mrf.mxu0
    %v231 = vadd.f32 0.0, %v230
    %v232 = vpop.f32.mrf.mxu0
    %v233 = vpop.f32.mrf.mxu0
    %v234 = vadd.f32 0.0, %v233
    %v235 = vpop.f32.mrf.mxu0
    %236 = vmatprep.mubr.bf16.mxu0 0
    %237 = vmatmul.mubr.bf16.gmra.mxu0 %v118
    %v238 = vpop.f32.mrf.mxu0
    %v239 = vadd.f32 0.0, %v238
    %v240 = vpop.f32.mrf.mxu0
    %v241 = vpop.f32.mrf.mxu0
    %v242 = vadd.f32 0.0, %v241
    %v243 = vpop.f32.mrf.mxu0
    %244 = vmatprep.mubr.bf16.mxu0 0
    %245 = vmatmul.mubr.bf16.gmra.mxu0 %v119
    %v246 = vpop.f32.mrf.mxu0
    %v247 = vadd.f32 0.0, %v246
    %v248 = vpop.f32.mrf.mxu0
    %v249 = vpop.f32.mrf.mxu0
    %v250 = vadd.f32 0.0, %v249
    %v251 = vpop.f32.mrf.mxu0
    %252 = vmatprep.mubr.bf16.mxu0 0
    %253 = vmatmul.mubr.bf16.gmra.mxu0 %v120
    %v254 = vpop.f32.mrf.mxu0
    %v255 = vadd.f32 0.0, %v254
    %v256 = vpop.f32.mrf.mxu0
    %v257 = vpop.f32.mrf.mxu0
    %v258 = vadd.f32 0.0, %v257
    %v259 = vpop.f32.mrf.mxu0
    %260 = vmatprep.mubr.bf16.mxu0 0
    %261 = vmatmul.mubr.bf16.gmra.mxu0 %v121
    %v262 = vpop.f32.mrf.mxu0
    %v263 = vadd.f32 0.0, %v262
    %v264 = vpop.f32.mrf.mxu0
    %v265 = vpop.f32.mrf.mxu0
    %v266 = vadd.f32 0.0, %v265
    %v267 = vpop.f32.mrf.mxu0
    %268 = vmatprep.mubr.bf16.mxu0 0
    %269 = vmatmul.mubr.bf16.gmra.mxu0 %v122
    %v270 = vpop.f32.mrf.mxu0
    %v271 = vadd.f32 0.0, %v270
    %v272 = vpop.f32.mrf.mxu0
    %v273 = vpop.f32.mrf.mxu0
    %v274 = vadd.f32 0.0, %v273
    %v275 = vpop.f32.mrf.mxu0
    %276 = vmatprep.mubr.bf16.mxu0 0
    %277 = vmatmul.mubr.bf16.gmra.mxu0 %v123
    %v278 = vpop.f32.mrf.mxu0
    %v279 = vadd.f32 0.0, %v278
    %v280 = vpop.f32.mrf.mxu0
    %v281 = vpop.f32.mrf.mxu0
    %v282 = vadd.f32 0.0, %v281
    %v283 = vpop.f32.mrf.mxu0
    %284 = vdwg.mxu0
    %v285 = vadd.f32 %v96, %v223
    %v286 = vadd.f32 %v97, %v226
    %v287 = vadd.f32 %v98, %v231
    %v288 = vadd.f32 %v99, %v234
    %v289 = vadd.f32 %v100, %v239
    %v290 = vadd.f32 %v101, %v242
    %v291 = vadd.f32 %v102, %v247
    %v292 = vadd.f32 %v103, %v250
    %v293 = vadd.f32 %v104, %v255
    %v294 = vadd.f32 %v105, %v258
    %v295 = vadd.f32 %v106, %v263
    %v296 = vadd.f32 %v107, %v266
    %v297 = vadd.f32 %v108, %v271
    %v298 = vadd.f32 %v109, %v274
    %v299 = vadd.f32 %v110, %v279
    %v300 = vadd.f32 %v111, %v282
    %301 = vst [vmem:[#allocation2] sm:$0xff] %v285
    %302 = vst [vmem:[#allocation2 + $0x8] sm:$0xff] %v286
    %303 = vst [vmem:[#allocation2 + $0x10] sm:$0xff] %v287
    %304 = vst [vmem:[#allocation2 + $0x18] sm:$0xff] %v288
    %305 = vst [vmem:[#allocation2 + $0x20] sm:$0xff] %v289
    %306 = vst [vmem:[#allocation2 + $0x28] sm:$0xff] %v290
    %307 = vst [vmem:[#allocation2 + $0x30] sm:$0xff] %v291
    %308 = vst [vmem:[#allocation2 + $0x38] sm:$0xff] %v292
    %309 = vst [vmem:[#allocation2 + $0x40] sm:$0xff] %v293
    %310 = vst [vmem:[#allocation2 + $0x48] sm:$0xff] %v294
    %311 = vst [vmem:[#allocation2 + $0x50] sm:$0xff] %v295
    %312 = vst [vmem:[#allocation2 + $0x58] sm:$0xff] %v296
    %313 = vst [vmem:[#allocation2 + $0x60] sm:$0xff] %v297
    %314 = vst [vmem:[#allocation2 + $0x68] sm:$0xff] %v298
    %315 = vst [vmem:[#allocation2 + $0x70] sm:$0xff] %v299
    %316 = vst [vmem:[#allocation2 + $0x78] sm:$0xff] %v300
    // Predicated region
    $region54: #{tpu_custom_call.1} parent=1 // pred_check
      %p317 = pneg %p76
    $region55: #{tpu_custom_call.1} parent=1 // pred_check_branch
      %319 = sbr.rel (%p317) target = $region57
    $region56: #{tpu_custom_call.1} parent=1 // pred_region
      %v320 = vld [vmem:[#allocation2] sm:$0xff]
      %v321 = vld [vmem:[#allocation2 + $0x8] sm:$0xff]
      %v322 = vld [vmem:[#allocation2 + $0x10] sm:$0xff]
      %v323 = vld [vmem:[#allocation2 + $0x18] sm:$0xff]
      %v324 = vld [vmem:[#allocation2 + $0x20] sm:$0xff]
      %v325 = vld [vmem:[#allocation2 + $0x28] sm:$0xff]
      %v326 = vld [vmem:[#allocation2 + $0x30] sm:$0xff]
      %v327 = vld [vmem:[#allocation2 + $0x38] sm:$0xff]
      %v328 = vld [vmem:[#allocation2 + $0x40] sm:$0xff]
      %v329 = vld [vmem:[#allocation2 + $0x48] sm:$0xff]
      %v330 = vld [vmem:[#allocation2 + $0x50] sm:$0xff]
      %v331 = vld [vmem:[#allocation2 + $0x58] sm:$0xff]
      %v332 = vld [vmem:[#allocation2 + $0x60] sm:$0xff]
      %v333 = vld [vmem:[#allocation2 + $0x68] sm:$0xff]
      %v334 = vld [vmem:[#allocation2 + $0x70] sm:$0xff]
      %v335 = vld [vmem:[#allocation2 + $0x78] sm:$0xff]
      %v336 = vld [vmem:[%s4] sm:$0xff]
      %v337 = vld [vmem:[%s4 + $0x8] sm:$0xff]
      %v338 = vld [vmem:[%s4 + $0x10] sm:$0xff]
      %v339 = vld [vmem:[%s4 + $0x18] sm:$0xff]
      %v340 = vld [vmem:[%s4 + $0x20] sm:$0xff]
      %v341 = vld [vmem:[%s4 + $0x28] sm:$0xff]
      %v342 = vld [vmem:[%s4 + $0x30] sm:$0xff]
      %v343 = vld [vmem:[%s4 + $0x38] sm:$0xff]
      %v344 = vld [vmem:[%s4 + $0x40] sm:$0xff]
      %v345 = vld [vmem:[%s4 + $0x48] sm:$0xff]
      %v346 = vld [vmem:[%s4 + $0x50] sm:$0xff]
      %v347 = vld [vmem:[%s4 + $0x58] sm:$0xff]
      %v348 = vld [vmem:[%s4 + $0x60] sm:$0xff]
      %v349 = vld [vmem:[%s4 + $0x68] sm:$0xff]
      %v350 = vld [vmem:[%s4 + $0x70] sm:$0xff]
      %v351 = vld [vmem:[%s4 + $0x78] sm:$0xff]
      %353 = vset.pattern.permute.xlu0 0
      %354 = vperm.xlu0 %353, %v336
      %v355 = vpop.permute.xlu0 %354
      %358 = vset.pattern.permute.xlu0 0
      %359 = vperm.xlu0 %358, %v337
      %v360 = vpop.permute.xlu0 %359
      %363 = vset.pattern.permute.xlu0 0
      %364 = vperm.xlu0 %363, %v338
      %v365 = vpop.permute.xlu0 %364
      %368 = vset.pattern.permute.xlu0 0
      %369 = vperm.xlu0 %368, %v339
      %v370 = vpop.permute.xlu0 %369
      %373 = vset.pattern.permute.xlu0 0
      %374 = vperm.xlu0 %373, %v340
      %v375 = vpop.permute.xlu0 %374
      %378 = vset.pattern.permute.xlu0 0
      %379 = vperm.xlu0 %378, %v341
      %v380 = vpop.permute.xlu0 %379
      %383 = vset.pattern.permute.xlu0 0
      %384 = vperm.xlu0 %383, %v342
      %v385 = vpop.permute.xlu0 %384
      %388 = vset.pattern.permute.xlu0 0
      %389 = vperm.xlu0 %388, %v343
      %v390 = vpop.permute.xlu0 %389
      %393 = vset.pattern.permute.xlu0 0
      %394 = vperm.xlu0 %393, %v344
      %v395 = vpop.permute.xlu0 %394
      %398 = vset.pattern.permute.xlu0 0
      %399 = vperm.xlu0 %398, %v345
      %v400 = vpop.permute.xlu0 %399
      %403 = vset.pattern.permute.xlu0 0
      %404 = vperm.xlu0 %403, %v346
      %v405 = vpop.permute.xlu0 %404
      %408 = vset.pattern.permute.xlu0 0
      %409 = vperm.xlu0 %408, %v347
      %v410 = vpop.permute.xlu0 %409
      %413 = vset.pattern.permute.xlu0 0
      %414 = vperm.xlu0 %413, %v348
      %v415 = vpop.permute.xlu0 %414
      %418 = vset.pattern.permute.xlu0 0
      %419 = vperm.xlu0 %418, %v349
      %v420 = vpop.permute.xlu0 %419
      %423 = vset.pattern.permute.xlu0 0
      %424 = vperm.xlu0 %423, %v350
      %v425 = vpop.permute.xlu0 %424
      %428 = vset.pattern.permute.xlu0 0
      %429 = vperm.xlu0 %428, %v351
      %v430 = vpop.permute.xlu0 %429
      %v432 = vmul.f32 %v320, %v355
      %v433 = vmul.f32 %v321, %v360
      %v434 = vmul.f32 %v322, %v365
      %v435 = vmul.f32 %v323, %v370
      %v436 = vmul.f32 %v324, %v375
      %v437 = vmul.f32 %v325, %v380
      %v438 = vmul.f32 %v326, %v385
      %v439 = vmul.f32 %v327, %v390
      %v440 = vmul.f32 %v328, %v395
      %v441 = vmul.f32 %v329, %v400
      %v442 = vmul.f32 %v330, %v405
      %v443 = vmul.f32 %v331, %v410
      %v444 = vmul.f32 %v332, %v415
      %v445 = vmul.f32 %v333, %v420
      %v446 = vmul.f32 %v334, %v425
      %v447 = vmul.f32 %v335, %v430
      %s448 = sld [smem:[#allocation3]]
      %s449 = sadd.f32 %s448, 1.0
      %v450 = vld [vmem:[%s3] sm:$0xf]
      %v451 = vld [vmem:[%s3 + $0x4] sm:$0xf]
      %v452 = vld [vmem:[%s3 + $0x8] sm:$0xf]
      %v453 = vld [vmem:[%s3 + $0xc] sm:$0xf]
      %v454 = vld [vmem:[%s3 + $0x10] sm:$0xf]
      %v455 = vld [vmem:[%s3 + $0x14] sm:$0xf]
      %v456 = vld [vmem:[%s3 + $0x18] sm:$0xf]
      %v457 = vld [vmem:[%s3 + $0x1c] sm:$0xf]
      %v458 = vld [vmem:[%s3 + $0x20] sm:$0xf]
      %v459 = vld [vmem:[%s3 + $0x24] sm:$0xf]
      %v460 = vld [vmem:[%s3 + $0x28] sm:$0xf]
      %v461 = vld [vmem:[%s3 + $0x2c] sm:$0xf]
      %v462 = vld [vmem:[%s3 + $0x30] sm:$0xf]
      %v463 = vld [vmem:[%s3 + $0x34] sm:$0xf]
      %v464 = vld [vmem:[%s3 + $0x38] sm:$0xf]
      %v465 = vld [vmem:[%s3 + $0x3c] sm:$0xf]
      %v466 = vunpack.c.l.bf16 %v450
      %v467 = vunpack.c.l.bf16 %v451
      %v468 = vunpack.c.l.bf16 %v452
      %v469 = vunpack.c.l.bf16 %v453
      %v470 = vunpack.c.l.bf16 %v454
      %v471 = vunpack.c.l.bf16 %v455
      %v472 = vunpack.c.l.bf16 %v456
      %v473 = vunpack.c.l.bf16 %v457
      %v474 = vunpack.c.l.bf16 %v458
      %v475 = vunpack.c.l.bf16 %v459
      %v476 = vunpack.c.l.bf16 %v460
      %v477 = vunpack.c.l.bf16 %v461
      %v478 = vunpack.c.l.bf16 %v462
      %v479 = vunpack.c.l.bf16 %v463
      %v480 = vunpack.c.l.bf16 %v464
      %v481 = vunpack.c.l.bf16 %v465
      %v482 = vstv %s449
      %v483 = vmul.f32 %v482, %v466
      %v484 = vmul.f32 %v482, %v467
      %v485 = vmul.f32 %v482, %v468
      %v486 = vmul.f32 %v482, %v469
      %v487 = vmul.f32 %v482, %v470
      %v488 = vmul.f32 %v482, %v471
      %v489 = vmul.f32 %v482, %v472
      %v490 = vmul.f32 %v482, %v473
      %v491 = vmul.f32 %v482, %v474
      %v492 = vmul.f32 %v482, %v475
      %v493 = vmul.f32 %v482, %v476
      %v494 = vmul.f32 %v482, %v477
      %v495 = vmul.f32 %v482, %v478
      %v496 = vmul.f32 %v482, %v479
      %v497 = vmul.f32 %v482, %v480
      %v498 = vmul.f32 %v482, %v481
      %v499 = vadd.f32 %v483, %v432
      %v500 = vadd.f32 %v484, %v433
      %v501 = vadd.f32 %v485, %v434
      %v502 = vadd.f32 %v486, %v435
      %v503 = vadd.f32 %v487, %v436
      %v504 = vadd.f32 %v488, %v437
      %v505 = vadd.f32 %v489, %v438
      %v506 = vadd.f32 %v490, %v439
      %v507 = vadd.f32 %v491, %v440
      %v508 = vadd.f32 %v492, %v441
      %v509 = vadd.f32 %v493, %v442
      %v510 = vadd.f32 %v494, %v443
      %v511 = vadd.f32 %v495, %v444
      %v512 = vadd.f32 %v496, %v445
      %v513 = vadd.f32 %v497, %v446
      %v514 = vadd.f32 %v498, %v447
      %v515 = vld [vmem:[#allocation7] sm:$0xf]
      %v516 = vld [vmem:[#allocation7 + $0x4] sm:$0xf]
      %v517 = vld [vmem:[#allocation7 + $0x8] sm:$0xf]
      %v518 = vld [vmem:[#allocation7 + $0xc] sm:$0xf]
      %v519 = vld [vmem:[#allocation7 + $0x10] sm:$0xf]
      %v520 = vld [vmem:[#allocation7 + $0x14] sm:$0xf]
      %v521 = vld [vmem:[#allocation7 + $0x18] sm:$0xf]
      %v522 = vld [vmem:[#allocation7 + $0x1c] sm:$0xf]
      %v523 = vld [vmem:[#allocation7 + $0x20] sm:$0xf]
      %v524 = vld [vmem:[#allocation7 + $0x24] sm:$0xf]
      %v525 = vld [vmem:[#allocation7 + $0x28] sm:$0xf]
      %v526 = vld [vmem:[#allocation7 + $0x2c] sm:$0xf]
      %v527 = vld [vmem:[#allocation7 + $0x30] sm:$0xf]
      %v528 = vld [vmem:[#allocation7 + $0x34] sm:$0xf]
      %v529 = vld [vmem:[#allocation7 + $0x38] sm:$0xf]
      %v530 = vld [vmem:[#allocation7 + $0x3c] sm:$0xf]
      %v531 = vld [vmem:[%s6] sm:$0x1]
      %v532 = vpack.c.bf16 %v500, %v499
      %v533 = vpack.c.bf16 %v502, %v501
      %v534 = vpack.c.bf16 %v504, %v503
      %v535 = vpack.c.bf16 %v506, %v505
      %v536 = vpack.c.bf16 %v508, %v507
      %v537 = vpack.c.bf16 %v510, %v509
      %v538 = vpack.c.bf16 %v512, %v511
      %v539 = vpack.c.bf16 %v514, %v513
      %v541 = vlaneseq
      %v542 = vshrl.u32 %v541, 7
      %v543 = vsub.s32 0, %v542
      %v544 = vrot.slane %v531, %v543
      %v562 = vunpack.c.l.b16 %v515
      %v563 = vunpack.c.l.b16 %v516
      %v564 = vunpack.c.l.b16 %v517
      %v565 = vunpack.c.l.b16 %v518
      %v566 = vunpack.c.l.b16 %v519
      %v567 = vunpack.c.l.b16 %v520
      %v568 = vunpack.c.l.b16 %v521
      %v569 = vunpack.c.l.b16 %v522
      %v570 = vunpack.c.l.b16 %v523
      %v571 = vunpack.c.l.b16 %v524
      %v572 = vunpack.c.l.b16 %v525
      %v573 = vunpack.c.l.b16 %v526
      %v574 = vunpack.c.l.b16 %v527
      %v575 = vunpack.c.l.b16 %v528
      %v576 = vunpack.c.l.b16 %v529
      %v577 = vunpack.c.l.b16 %v530
      %v578 = vpack.c.b16 %v563, %v562
      %v579 = vpack.c.b16 %v565, %v564
      %v580 = vpack.c.b16 %v567, %v566
      %v581 = vpack.c.b16 %v569, %v568
      %v582 = vpack.c.b16 %v571, %v570
      %v583 = vpack.c.b16 %v573, %v572
      %v584 = vpack.c.b16 %v575, %v574
      %v585 = vpack.c.b16 %v577, %v576
      %594 = vmatprep.subr.bf16.mxu0 0
      %595 = vmatpush1.bf16.msra.mxu0 %v585
      %596 = vmatprep.subr.bf16.mxu0 0
      %597 = vmatpush1.bf16.msra.mxu0 %v584
      %598 = vmatprep.subr.bf16.mxu0 0
      %599 = vmatpush1.bf16.msra.mxu0 %v583
      %600 = vmatprep.subr.bf16.mxu0 0
      %601 = vmatpush1.bf16.msra.mxu0 %v582
      %602 = vmatprep.subr.bf16.mxu0 0
      %603 = vmatpush1.bf16.msra.mxu0 %v581
      %604 = vmatprep.subr.bf16.mxu0 0
      %605 = vmatpush1.bf16.msra.mxu0 %v580
      %606 = vmatprep.subr.bf16.mxu0 0
      %607 = vmatpush1.bf16.msra.mxu0 %v579
      %608 = vmatprep.subr.bf16.mxu0 0
      %609 = vmatpush1.bf16.msra.mxu0 %v578
      %610 = vmatprep.subr.bf16.mxu0 0
      %611 = vmatpush2.bf16.msra.mxu0 0
      %612 = vmatprep.subr.bf16.mxu0 0
      %613 = vmatpush2.bf16.msra.mxu0 0
      %614 = vmatprep.subr.bf16.mxu0 0
      %615 = vmatpush2.bf16.msra.mxu0 0
      %616 = vmatprep.subr.bf16.mxu0 0
      %617 = vmatpush2.bf16.msra.mxu0 0
      %618 = vmatprep.subr.bf16.mxu0 0
      %619 = vmatpush2.bf16.msra.mxu0 0
      %620 = vmatprep.subr.bf16.mxu0 0
      %621 = vmatpush2.bf16.msra.mxu0 0
      %622 = vmatprep.subr.bf16.mxu0 0
      %623 = vmatpush2.bf16.msra.mxu0 0
      %624 = vmatprep.subr.bf16.mxu0 0
      %625 = vmatpush2.bf16.msra.mxu0 0
      %626 = vmatprep.mubr.bf16.mxu0 0
      %627 = vmatmul.mubr.bf16.gmra.mxu0 %v532
      %v628 = vpop.f32.mrf.mxu0
      %v629 = vadd.f32 %v544, %v628
      %v630 = vpop.f32.mrf.mxu0
      %v631 = vpop.f32.mrf.mxu0
      %v632 = vadd.f32 %v544, %v631
      %v633 = vpop.f32.mrf.mxu0
      %634 = vmatprep.mubr.bf16.mxu0 0
      %635 = vmatmul.mubr.bf16.gmra.mxu0 %v533
      %v636 = vpop.f32.mrf.mxu0
      %v637 = vadd.f32 %v544, %v636
      %v638 = vpop.f32.mrf.mxu0
      %v639 = vpop.f32.mrf.mxu0
      %v640 = vadd.f32 %v544, %v639
      %v641 = vpop.f32.mrf.mxu0
      %642 = vmatprep.mubr.bf16.mxu0 0
      %643 = vmatmul.mubr.bf16.gmra.mxu0 %v534
      %v644 = vpop.f32.mrf.mxu0
      %v645 = vadd.f32 %v544, %v644
      %v646 = vpop.f32.mrf.mxu0
      %v647 = vpop.f32.mrf.mxu0
      %v648 = vadd.f32 %v544, %v647
      %v649 = vpop.f32.mrf.mxu0
      %650 = vmatprep.mubr.bf16.mxu0 0
      %651 = vmatmul.mubr.bf16.gmra.mxu0 %v535
      %v652 = vpop.f32.mrf.mxu0
      %v653 = vadd.f32 %v544, %v652
      %v654 = vpop.f32.mrf.mxu0
      %v655 = vpop.f32.mrf.mxu0
      %v656 = vadd.f32 %v544, %v655
      %v657 = vpop.f32.mrf.mxu0
      %658 = vmatprep.mubr.bf16.mxu0 0
      %659 = vmatmul.mubr.bf16.gmra.mxu0 %v536
      %v660 = vpop.f32.mrf.mxu0
      %v661 = vadd.f32 %v544, %v660
      %v662 = vpop.f32.mrf.mxu0
      %v663 = vpop.f32.mrf.mxu0
      %v664 = vadd.f32 %v544, %v663
      %v665 = vpop.f32.mrf.mxu0
      %666 = vmatprep.mubr.bf16.mxu0 0
      %667 = vmatmul.mubr.bf16.gmra.mxu0 %v537
      %v668 = vpop.f32.mrf.mxu0
      %v669 = vadd.f32 %v544, %v668
      %v670 = vpop.f32.mrf.mxu0
      %v671 = vpop.f32.mrf.mxu0
      %v672 = vadd.f32 %v544, %v671
      %v673 = vpop.f32.mrf.mxu0
      %674 = vmatprep.mubr.bf16.mxu0 0
      %675 = vmatmul.mubr.bf16.gmra.mxu0 %v538
      %v676 = vpop.f32.mrf.mxu0
      %v677 = vadd.f32 %v544, %v676
      %v678 = vpop.f32.mrf.mxu0
      %v679 = vpop.f32.mrf.mxu0
      %v680 = vadd.f32 %v544, %v679
      %v681 = vpop.f32.mrf.mxu0
      %682 = vmatprep.mubr.bf16.mxu0 0
      %683 = vmatmul.mubr.bf16.gmra.mxu0 %v539
      %v684 = vpop.f32.mrf.mxu0
      %v685 = vadd.f32 %v544, %v684
      %v686 = vpop.f32.mrf.mxu0
      %v687 = vpop.f32.mrf.mxu0
      %v688 = vadd.f32 %v544, %v687
      %v689 = vpop.f32.mrf.mxu0
      %690 = vdwg.mxu0
      %v691 = vmax.f32 %v629, 0.0
      %v692 = vmax.f32 %v632, 0.0
      %v693 = vmax.f32 %v637, 0.0
      %v694 = vmax.f32 %v640, 0.0
      %v695 = vmax.f32 %v645, 0.0
      %v696 = vmax.f32 %v648, 0.0
      %v697 = vmax.f32 %v653, 0.0
      %v698 = vmax.f32 %v656, 0.0
      %v699 = vmax.f32 %v661, 0.0
      %v700 = vmax.f32 %v664, 0.0
      %v701 = vmax.f32 %v669, 0.0
      %v702 = vmax.f32 %v672, 0.0
      %v703 = vmax.f32 %v677, 0.0
      %v704 = vmax.f32 %v680, 0.0
      %v705 = vmax.f32 %v685, 0.0
      %v706 = vmax.f32 %v688, 0.0
      %v707 = vld [vmem:[#allocation9] sm:$0xf]
      %v708 = vld [vmem:[#allocation9 + $0x4] sm:$0xf]
      %v709 = vld [vmem:[#allocation9 + $0x8] sm:$0xf]
      %v710 = vld [vmem:[#allocation9 + $0xc] sm:$0xf]
      %v711 = vld [vmem:[#allocation9 + $0x10] sm:$0xf]
      %v712 = vld [vmem:[#allocation9 + $0x14] sm:$0xf]
      %v713 = vld [vmem:[#allocation9 + $0x18] sm:$0xf]
      %v714 = vld [vmem:[#allocation9 + $0x1c] sm:$0xf]
      %v715 = vld [vmem:[#allocation9 + $0x20] sm:$0xf]
      %v716 = vld [vmem:[#allocation9 + $0x24] sm:$0xf]
      %v717 = vld [vmem:[#allocation9 + $0x28] sm:$0xf]
      %v718 = vld [vmem:[#allocation9 + $0x2c] sm:$0xf]
      %v719 = vld [vmem:[#allocation9 + $0x30] sm:$0xf]
      %v720 = vld [vmem:[#allocation9 + $0x34] sm:$0xf]
      %v721 = vld [vmem:[#allocation9 + $0x38] sm:$0xf]
      %v722 = vld [vmem:[#allocation9 + $0x3c] sm:$0xf]
      %v723 = vld [vmem:[%s8] sm:$0x1]
      %v724 = vpack.c.bf16 %v692, %v691
      %v725 = vpack.c.bf16 %v694, %v693
      %v726 = vpack.c.bf16 %v696, %v695
      %v727 = vpack.c.bf16 %v698, %v697
      %v728 = vpack.c.bf16 %v700, %v699
      %v729 = vpack.c.bf16 %v702, %v701
      %v730 = vpack.c.bf16 %v704, %v703
      %v731 = vpack.c.bf16 %v706, %v705
      %v733 = vlaneseq
      %v734 = vshrl.u32 %v733, 7
      %v735 = vsub.s32 0, %v734
      %v736 = vrot.slane %v723, %v735
      %v754 = vunpack.c.l.b16 %v707
      %v755 = vunpack.c.l.b16 %v708
      %v756 = vunpack.c.l.b16 %v709
      %v757 = vunpack.c.l.b16 %v710
      %v758 = vunpack.c.l.b16 %v711
      %v759 = vunpack.c.l.b16 %v712
      %v760 = vunpack.c.l.b16 %v713
      %v761 = vunpack.c.l.b16 %v714
      %v762 = vunpack.c.l.b16 %v715
      %v763 = vunpack.c.l.b16 %v716
      %v764 = vunpack.c.l.b16 %v717
      %v765 = vunpack.c.l.b16 %v718
      %v766 = vunpack.c.l.b16 %v719
      %v767 = vunpack.c.l.b16 %v720
      %v768 = vunpack.c.l.b16 %v721
      %v769 = vunpack.c.l.b16 %v722
      %v770 = vpack.c.b16 %v755, %v754
      %v771 = vpack.c.b16 %v757, %v756
      %v772 = vpack.c.b16 %v759, %v758
      %v773 = vpack.c.b16 %v761, %v760
      %v774 = vpack.c.b16 %v763, %v762
      %v775 = vpack.c.b16 %v765, %v764
      %v776 = vpack.c.b16 %v767, %v766
      %v777 = vpack.c.b16 %v769, %v768
      %786 = vmatprep.subr.bf16.mxu0 0
      %787 = vmatpush1.bf16.msra.mxu0 %v777
      %788 = vmatprep.subr.bf16.mxu0 0
      %789 = vmatpush1.bf16.msra.mxu0 %v776
      %790 = vmatprep.subr.bf16.mxu0 0
      %791 = vmatpush1.bf16.msra.mxu0 %v775
      %792 = vmatprep.subr.bf16.mxu0 0
      %793 = vmatpush1.bf16.msra.mxu0 %v774
      %794 = vmatprep.subr.bf16.mxu0 0
      %795 = vmatpush1.bf16.msra.mxu0 %v773
      %796 = vmatprep.subr.bf16.mxu0 0
      %797 = vmatpush1.bf16.msra.mxu0 %v772
      %798 = vmatprep.subr.bf16.mxu0 0
      %799 = vmatpush1.bf16.msra.mxu0 %v771
      %800 = vmatprep.subr.bf16.mxu0 0
      %801 = vmatpush1.bf16.msra.mxu0 %v770
      %802 = vmatprep.subr.bf16.mxu0 0
      %803 = vmatpush2.bf16.msra.mxu0 0
      %804 = vmatprep.subr.bf16.mxu0 0
      %805 = vmatpush2.bf16.msra.mxu0 0
      %806 = vmatprep.subr.bf16.mxu0 0
      %807 = vmatpush2.bf16.msra.mxu0 0
      %808 = vmatprep.subr.bf16.mxu0 0
      %809 = vmatpush2.bf16.msra.mxu0 0
      %810 = vmatprep.subr.bf16.mxu0 0
      %811 = vmatpush2.bf16.msra.mxu0 0
      %812 = vmatprep.subr.bf16.mxu0 0
      %813 = vmatpush2.bf16.msra.mxu0 0
      %814 = vmatprep.subr.bf16.mxu0 0
      %815 = vmatpush2.bf16.msra.mxu0 0
      %816 = vmatprep.subr.bf16.mxu0 0
      %817 = vmatpush2.bf16.msra.mxu0 0
      %818 = vmatprep.mubr.bf16.mxu0 0
      %819 = vmatmul.mubr.bf16.gmra.mxu0 %v724
      %v820 = vpop.f32.mrf.mxu0
      %v821 = vadd.f32 %v736, %v820
      %v822 = vpop.f32.mrf.mxu0
      %v823 = vpop.f32.mrf.mxu0
      %v824 = vadd.f32 %v736, %v823
      %v825 = vpop.f32.mrf.mxu0
      %826 = vmatprep.mubr.bf16.mxu0 0
      %827 = vmatmul.mubr.bf16.gmra.mxu0 %v725
      %v828 = vpop.f32.mrf.mxu0
      %v829 = vadd.f32 %v736, %v828
      %v830 = vpop.f32.mrf.mxu0
      %v831 = vpop.f32.mrf.mxu0
      %v832 = vadd.f32 %v736, %v831
      %v833 = vpop.f32.mrf.mxu0
      %834 = vmatprep.mubr.bf16.mxu0 0
      %835 = vmatmul.mubr.bf16.gmra.mxu0 %v726
      %v836 = vpop.f32.mrf.mxu0
      %v837 = vadd.f32 %v736, %v836
      %v838 = vpop.f32.mrf.mxu0
      %v839 = vpop.f32.mrf.mxu0
      %v840 = vadd.f32 %v736, %v839
      %v841 = vpop.f32.mrf.mxu0
      %842 = vmatprep.mubr.bf16.mxu0 0
      %843 = vmatmul.mubr.bf16.gmra.mxu0 %v727
      %v844 = vpop.f32.mrf.mxu0
      %v845 = vadd.f32 %v736, %v844
      %v846 = vpop.f32.mrf.mxu0
      %v847 = vpop.f32.mrf.mxu0
      %v848 = vadd.f32 %v736, %v847
      %v849 = vpop.f32.mrf.mxu0
      %850 = vmatprep.mubr.bf16.mxu0 0
      %851 = vmatmul.mubr.bf16.gmra.mxu0 %v728
      %v852 = vpop.f32.mrf.mxu0
      %v853 = vadd.f32 %v736, %v852
      %v854 = vpop.f32.mrf.mxu0
      %v855 = vpop.f32.mrf.mxu0
      %v856 = vadd.f32 %v736, %v855
      %v857 = vpop.f32.mrf.mxu0
      %858 = vmatprep.mubr.bf16.mxu0 0
      %859 = vmatmul.mubr.bf16.gmra.mxu0 %v729
      %v860 = vpop.f32.mrf.mxu0
      %v861 = vadd.f32 %v736, %v860
      %v862 = vpop.f32.mrf.mxu0
      %v863 = vpop.f32.mrf.mxu0
      %v864 = vadd.f32 %v736, %v863
      %v865 = vpop.f32.mrf.mxu0
      %866 = vmatprep.mubr.bf16.mxu0 0
      %867 = vmatmul.mubr.bf16.gmra.mxu0 %v730
      %v868 = vpop.f32.mrf.mxu0
      %v869 = vadd.f32 %v736, %v868
      %v870 = vpop.f32.mrf.mxu0
      %v871 = vpop.f32.mrf.mxu0
      %v872 = vadd.f32 %v736, %v871
      %v873 = vpop.f32.mrf.mxu0
      %874 = vmatprep.mubr.bf16.mxu0 0
      %875 = vmatmul.mubr.bf16.gmra.mxu0 %v731
      %v876 = vpop.f32.mrf.mxu0
      %v877 = vadd.f32 %v736, %v876
      %v878 = vpop.f32.mrf.mxu0
      %v879 = vpop.f32.mrf.mxu0
      %v880 = vadd.f32 %v736, %v879
      %v881 = vpop.f32.mrf.mxu0
      %882 = vdwg.mxu0
      %v883 = vmax.f32 %v821, 0.0
      %v884 = vmax.f32 %v824, 0.0
      %v885 = vmax.f32 %v829, 0.0
      %v886 = vmax.f32 %v832, 0.0
      %v887 = vmax.f32 %v837, 0.0
      %v888 = vmax.f32 %v840, 0.0
      %v889 = vmax.f32 %v845, 0.0
      %v890 = vmax.f32 %v848, 0.0
      %v891 = vmax.f32 %v853, 0.0
      %v892 = vmax.f32 %v856, 0.0
      %v893 = vmax.f32 %v861, 0.0
      %v894 = vmax.f32 %v864, 0.0
      %v895 = vmax.f32 %v869, 0.0
      %v896 = vmax.f32 %v872, 0.0
      %v897 = vmax.f32 %v877, 0.0
      %v898 = vmax.f32 %v880, 0.0
      %v899 = vpack.c.bf16 %v884, %v883
      %v900 = vpack.c.bf16 %v886, %v885
      %v901 = vpack.c.bf16 %v888, %v887
      %v902 = vpack.c.bf16 %v890, %v889
      %v903 = vpack.c.bf16 %v892, %v891
      %v904 = vpack.c.bf16 %v894, %v893
      %v905 = vpack.c.bf16 %v896, %v895
      %v906 = vpack.c.bf16 %v898, %v897
      %v915 = vunpack.c.l.b16 %v899
      %v916 = vunpack.c.h.b16 %v899
      %v917 = vunpack.c.l.b16 %v900
      %v918 = vunpack.c.h.b16 %v900
      %v919 = vunpack.c.l.b16 %v901
      %v920 = vunpack.c.h.b16 %v901
      %v921 = vunpack.c.l.b16 %v902
      %v922 = vunpack.c.h.b16 %v902
      %v923 = vunpack.c.l.b16 %v903
      %v924 = vunpack.c.h.b16 %v903
      %v925 = vunpack.c.l.b16 %v904
      %v926 = vunpack.c.h.b16 %v904
      %v927 = vunpack.c.l.b16 %v905
      %v928 = vunpack.c.h.b16 %v905
      %v929 = vunpack.c.l.b16 %v906
      %v930 = vunpack.c.h.b16 %v906
      %v931 = vpack.c.b16 %v915, %v915
      %v932 = vpack.c.b16 %v916, %v916
      %v933 = vpack.c.b16 %v917, %v917
      %v934 = vpack.c.b16 %v918, %v918
      %v935 = vpack.c.b16 %v919, %v919
      %v936 = vpack.c.b16 %v920, %v920
      %v937 = vpack.c.b16 %v921, %v921
      %v938 = vpack.c.b16 %v922, %v922
      %v939 = vpack.c.b16 %v923, %v923
      %v940 = vpack.c.b16 %v924, %v924
      %v941 = vpack.c.b16 %v925, %v925
      %v942 = vpack.c.b16 %v926, %v926
      %v943 = vpack.c.b16 %v927, %v927
      %v944 = vpack.c.b16 %v928, %v928
      %v945 = vpack.c.b16 %v929, %v929
      %v946 = vpack.c.b16 %v930, %v930
      %963 = vst [vmem:[#allocation10] sm:$0xf] %v931
      %964 = vst [vmem:[#allocation10 + $0x4] sm:$0xf] %v932
      %965 = vst [vmem:[#allocation10 + $0x8] sm:$0xf] %v933
      %966 = vst [vmem:[#allocation10 + $0xc] sm:$0xf] %v934
      %967 = vst [vmem:[#allocation10 + $0x10] sm:$0xf] %v935
      %968 = vst [vmem:[#allocation10 + $0x14] sm:$0xf] %v936
      %969 = vst [vmem:[#allocation10 + $0x18] sm:$0xf] %v937
      %970 = vst [vmem:[#allocation10 + $0x1c] sm:$0xf] %v938
      %971 = vst [vmem:[#allocation10 + $0x20] sm:$0xf] %v939
      %972 = vst [vmem:[#allocation10 + $0x24] sm:$0xf] %v940
      %973 = vst [vmem:[#allocation10 + $0x28] sm:$0xf] %v941
      %974 = vst [vmem:[#allocation10 + $0x2c] sm:$0xf] %v942
      %975 = vst [vmem:[#allocation10 + $0x30] sm:$0xf] %v943
      %976 = vst [vmem:[#allocation10 + $0x34] sm:$0xf] %v944
      %977 = vst [vmem:[#allocation10 + $0x38] sm:$0xf] %v945
      %978 = vst [vmem:[#allocation10 + $0x3c] sm:$0xf] %v946
    $region57: #{tpu_custom_call.1} parent=1 // pred_fallthru
      _
    // Predicated region
    $region58: #{tpu_custom_call.1} parent=1 // pred_check
      _
    $region59: #{tpu_custom_call.1} parent=1 // pred_check_branch
      %980 = sbr.rel (0) target = $region61
    $region60: #{tpu_custom_call.1} parent=1 // pred_region
      %s982 = ssub.s32 1024, 1024
      %983 = vsyncadd [#allocation6], %s982
      %s984 = sshll.u32 [#allocation10], 4
      %s985 = int_to_ptr.vmem [resolvable:$true] %s984
      %990 = dma.vmem_to_hbm [thread:$0]  %s985, 1024, %s9, [#allocation6], 64, 64, 4
    $region61: #{tpu_custom_call.1} parent=1 // pred_fallthru
      _
    // Predicated region
    $region62: #{tpu_custom_call.1} parent=1 // pred_check
      _
    $region63: #{tpu_custom_call.1} parent=1 // pred_check_branch
      %992 = sbr.rel (0) target = $region65
    $region64: #{tpu_custom_call.1} parent=1 // pred_region
      %993 = dma.done [#allocation6], 1024
    $region65: #{tpu_custom_call.1} parent=1 // pred_fallthru
      _
    %994 = vsyncpa [#allocation5], 1
    %995 = vsyncpa [#allocation8], 1
    %996 = vsyncpa [#allocation6], 1

</llo_original>
